<compile_context>
chip_gen: v5e
topology: v5e:2x2
jax: 0.10.0
libtpu: 0.0.40
codegen_flags: <defaults>
</compile_context>

<pallas_src>
import functools

import jax
import jax.numpy as jnp
from jax.experimental import pallas as pl
from jax.experimental.pallas import tpu as pltpu


def _round_up(x, m):
    return ((x + m - 1) // m) * m


# ---------------------------------------------------------------------------
# Fused kernel: all layers + pooling.
#   per layer l:   agg = (1 + eps) * x + A @ x           (eps = 0, DGL default)
#                  h   = relu(agg @ W1 + b1)
#                  y   = relu(h @ W2 + b2)               (outer F.relu)
#                  y   = y * bn_scale + bn_shift         (BatchNorm1d, eval)
#   node_emb[:, l*H:(l+1)*H]  = y
#   graph_emb[:, l*H:(l+1)*H] = S @ y                    (per-graph sum pooling)
# ---------------------------------------------------------------------------
def gin_fused_kernel(a_ref, x0_ref, w1_ref, b1_ref, w2_ref, b2_ref,
                     scale_ref, shift_ref, s_ref,
                     node_ref, graph_ref,
                     acc_ref, hprev_ref, *, num_layers, hidden):
    l = pl.program_id(0)          # layer index (state carried -> "arbitrary")
    k = pl.program_id(1)          # reduction tile over A's neighbor axis (last)
    nk = pl.num_programs(1)
    tk = a_ref.shape[1]
    h = hidden

    # Seed the layer-input scratch with the (padded) node features once.
    @pl.when((l == 0) & (k == 0))
    def _():
        hprev_ref[...] = x0_ref[...]

    # Zero the aggregation accumulator at the start of every layer.
    @pl.when(k == 0)
    def _():
        acc_ref[...] = jnp.zeros_like(acc_ref)

    # acc += A[:, k_tile] @ x[k_tile, :]   (bf16 operands, f32 accumulation)
    start = pl.multiple_of(k * tk, tk)
    x_tile = hprev_ref[pl.ds(start, tk), :]
    acc_ref[...] += jnp.dot(a_ref[...], x_tile.astype(jnp.bfloat16),
                            preferred_element_type=jnp.float32)

    # Layer epilogue once the neighbor sum over all k tiles is complete.
    @pl.when(k == nk - 1)
    def _():
        x_full = hprev_ref[...]
        agg = acc_ref[...] + x_full                       # (1 + eps) * x + sum
        hh = jnp.dot(agg, w1_ref[0],
                     preferred_element_type=jnp.float32) + b1_ref[0]
        hh = jnp.maximum(hh, 0.0)                         # apply_func inner ReLU
        y = jnp.dot(hh, w2_ref[0],
                    preferred_element_type=jnp.float32) + b2_ref[0]
        y = jnp.maximum(y, 0.0)                           # outer F.relu
        y = y * scale_ref[0] + shift_ref[0]               # eval BatchNorm1d
        hprev_ref[...] = y                                # input to next layer

        pooled = jnp.dot(s_ref[...], y,                   # per-graph sum pool
                         preferred_element_type=jnp.float32)

        # Static unroll over layers -> static column slices (no dynamic lane
        # offsets); outputs stay VMEM-resident across the whole grid and are
        # written back to HBM once, lane-dense ([*, L*H]).
        for li in range(num_layers):
            @pl.when(l == li)
            def _(li=li):
                node_ref[:, li * h:(li + 1) * h] = y
                graph_ref[:, li * h:(li + 1) * h] = pooled


# ---------------------------------------------------------------------------
# Wrapper: padding, operand packing, single pallas_call.
# ---------------------------------------------------------------------------
def gin_forward(adj, feats, seg_matrix, params):
    n, f = feats.shape
    num_layers = len(params)
    h = params[0][0].shape[1]
    b = seg_matrix.shape[0]
    assert f <= h, "input feature dim is padded into the hidden width"

    # Tile selection: stream A along the neighbor axis in 512-wide bf16 tiles
    # for larger graphs; small graphs use one full-width tile.
    if n <= 512:
        n_pad = _round_up(n, 16)          # bf16 sublane packing friendly
        tk = n_pad
    else:
        tk = 512
        n_pad = _round_up(n, tk)
    num_k = n_pad // tk
    b_pad = _round_up(b, 8)

    # Operand packing / padding.
    a_bf16 = jnp.zeros((n_pad, n_pad), jnp.bfloat16).at[:n, :n].set(
        adj.astype(jnp.bfloat16))
    x0 = jnp.zeros((n_pad, h), jnp.float32).at[:n, :f].set(
        feats.astype(jnp.float32))
    s = jnp.zeros((b_pad, n_pad), jnp.float32).at[:b, :n].set(
        seg_matrix.astype(jnp.float32))

    w1s, b1s, w2s, b2s, scs, shs = [], [], [], [], [], []
    for (w1, b1, w2, b2, sc, sh) in params:
        w1p = jnp.zeros((h, h), jnp.float32).at[:w1.shape[0], :].set(w1)
        w1s.append(w1p)
        b1s.append(b1)
        w2s.append(w2)
        b2s.append(b2)
        scs.append(sc)
        shs.append(sh)
    w1_stack = jnp.stack(w1s)            # [L, H, H]
    b1_stack = jnp.stack(b1s)            # [L, 1, H]
    w2_stack = jnp.stack(w2s)            # [L, H, H]
    b2_stack = jnp.stack(b2s)            # [L, 1, H]
    scale_stack = jnp.stack(scs)         # [L, 1, H]
    shift_stack = jnp.stack(shs)         # [L, 1, H]

    kernel = functools.partial(gin_fused_kernel,
                               num_layers=num_layers, hidden=h)

    node_pad, graph_pad = pl.pallas_call(
        kernel,
        out_shape=(
            jax.ShapeDtypeStruct((n_pad, num_layers * h), jnp.float32),
            jax.ShapeDtypeStruct((b_pad, num_layers * h), jnp.float32),
        ),
        grid=(num_layers, num_k),
        in_specs=[
            pl.BlockSpec((n_pad, tk), lambda l, k: (0, k)),      # A (bf16), k-tiled
            pl.BlockSpec((n_pad, h), lambda l, k: (0, 0)),       # input features
            pl.BlockSpec((1, h, h), lambda l, k: (l, 0, 0)),     # W1[l]
            pl.BlockSpec((1, 1, h), lambda l, k: (l, 0, 0)),     # b1[l]
            pl.BlockSpec((1, h, h), lambda l, k: (l, 0, 0)),     # W2[l]
            pl.BlockSpec((1, 1, h), lambda l, k: (l, 0, 0)),     # b2[l]
            pl.BlockSpec((1, 1, h), lambda l, k: (l, 0, 0)),     # bn scale[l]
            pl.BlockSpec((1, 1, h), lambda l, k: (l, 0, 0)),     # bn shift[l]
            pl.BlockSpec((b_pad, n_pad), lambda l, k: (0, 0)),   # pooling matrix S
        ],
        out_specs=(
            pl.BlockSpec((n_pad, num_layers * h), lambda l, k: (0, 0)),
            pl.BlockSpec((b_pad, num_layers * h), lambda l, k: (0, 0)),
        ),
        scratch_shapes=[
            pltpu.VMEM((n_pad, h), jnp.float32),   # A@x accumulator
            pltpu.VMEM((n_pad, h), jnp.float32),   # current-layer node features
        ],
        compiler_params=pltpu.CompilerParams(
            dimension_semantics=("arbitrary", "arbitrary"),
            vmem_limit_bytes=48 * 1024 * 1024,
        ),
    )(a_bf16, x0, w1_stack, b1_stack, w2_stack, b2_stack,
      scale_stack, shift_stack, s)

    graph_emb = graph_pad[:b]
    node_emb = node_pad[:n]
    return graph_emb, node_emb


# ---------------------------------------------------------------------------
# Pure-JAX reference (mirrors kernel numerics: bf16 A@x, f32 elsewhere).
# ---------------------------------------------------------------------------
def gin_reference(adj, feats, seg, params):
    xs = []
    x = feats
    for (w1, b1, w2, b2, scale, shift) in params:
        neigh = jnp.dot(adj.astype(jnp.bfloat16), x.astype(jnp.bfloat16),
                        preferred_element_type=jnp.float32)
        agg = neigh + x
        hh = jnp.maximum(agg @ w1 + b1, 0.0)
        y = jnp.maximum(hh @ w2 + b2, 0.0)
        y = y * scale + shift
        xs.append(y)
        x = y
    graph_emb = jnp.concatenate([seg @ xi for xi in xs], axis=-1)
    node_emb = jnp.concatenate(xs, axis=-1)
    return graph_emb, node_emb


def init_params(key, input_dim, hidden_dim, num_layers):
    params = []
    for i in range(num_layers):
        in_dim = input_dim if i == 0 else hidden_dim
        key, k1, k2, k3, k4 = jax.random.split(key, 5)
        w1 = jax.random.normal(k1, (in_dim, hidden_dim), jnp.float32) * 0.1
        b1 = jax.random.normal(k2, (1, hidden_dim), jnp.float32) * 0.01
        w2 = jax.random.normal(k3, (hidden_dim, hidden_dim), jnp.float32) * 0.1
        b2 = jax.random.normal(k4, (1, hidden_dim), jnp.float32) * 0.01
        # BatchNorm1d at init: gamma=1, beta=0, running_mean=0, running_var=1.
        gamma = jnp.ones((1, hidden_dim), jnp.float32)
        beta = jnp.zeros((1, hidden_dim), jnp.float32)
        run_mean = jnp.zeros((1, hidden_dim), jnp.float32)
        run_var = jnp.ones((1, hidden_dim), jnp.float32)
        scale = gamma / jnp.sqrt(run_var + 1e-5)
        shift = beta - run_mean * scale
        params.append((w1, b1, w2, b2, scale, shift))
    return params


if __name__ == "__main__":
    # config: node_feature_dim=8, gcn_hidden_dim=32, gcn_graph_num_layers=3
    NODE_DIM = 8
    HIDDEN = 32
    NUM_LAYERS = 3
    GRAPH_LEN = [8, 8]
    N_NODES = sum(GRAPH_LEN)
    B = len(GRAPH_LEN)

    key = jax.random.PRNGKey(0)
    key, kf, ka = jax.random.split(key, 3)

    # Node features [N, F].
    feats = jax.random.normal(kf, (N_NODES, NODE_DIM), jnp.float32)

    # Block-diagonal random adjacency (edges only within each graph), no self loops.
    node_graph = jnp.repeat(jnp.arange(B), jnp.array(GRAPH_LEN))          # [N]
    adj_full = (jax.random.uniform(ka, (N_NODES, N_NODES)) < 0.3).astype(jnp.float32)
    same_graph = (node_graph[:, None] == node_graph[None, :]).astype(jnp.float32)
    adj = adj_full * same_graph * (1.0 - jnp.eye(N_NODES, dtype=jnp.float32))

    # One-hot graph-assignment pooling matrix S [B, N].
    seg_matrix = (node_graph[None, :] == jnp.arange(B)[:, None]).astype(jnp.float32)

    params = init_params(key, NODE_DIM, HIDDEN, NUM_LAYERS)

    graph_emb, node_emb = gin_forward(adj, feats, seg_matrix, params)
    jax.block_until_ready((graph_emb, node_emb))

    assert graph_emb.shape == (B, NUM_LAYERS * HIDDEN)
    assert node_emb.shape == (N_NODES, NUM_LAYERS * HIDDEN)

    g_ref, n_ref = gin_reference(adj, feats, seg_matrix, params)
    assert jnp.allclose(node_emb, n_ref, rtol=1e-2, atol=1e-2)
    assert jnp.allclose(graph_emb, g_ref, rtol=1e-2, atol=1e-2)

    print("KERNEL_OK")
</pallas_src>

<mosaic_0001>
module attributes {stable_mosaic.version = 11 : i64} {
  func.func @gin_fused_kernel(%arg0: i32, %arg1: i32, %arg2: memref<16x16xbf16, #tpu.memory_space<vmem>>, %arg3: memref<16x32xf32, #tpu.memory_space<vmem>>, %arg4: memref<1x32x32xf32, #tpu.memory_space<vmem>>, %arg5: memref<1x1x32xf32, #tpu.memory_space<vmem>>, %arg6: memref<1x32x32xf32, #tpu.memory_space<vmem>>, %arg7: memref<1x1x32xf32, #tpu.memory_space<vmem>>, %arg8: memref<1x1x32xf32, #tpu.memory_space<vmem>>, %arg9: memref<1x1x32xf32, #tpu.memory_space<vmem>>, %arg10: memref<8x16xf32, #tpu.memory_space<vmem>>, %arg11: memref<16x96xf32, #tpu.memory_space<vmem>>, %arg12: memref<8x96xf32, #tpu.memory_space<vmem>>, %arg13: memref<16x32xf32, #tpu.memory_space<vmem>>, %arg14: memref<16x32xf32, #tpu.memory_space<vmem>>) attributes {dimension_semantics = [#tpu.dimension_semantics<arbitrary>, #tpu.dimension_semantics<arbitrary>], iteration_bounds = array<i64: 3, 1>, scalar_prefetch = 0 : i64, scratch_operands = 2 : i64, tpu.core_type = #tpu.core_type<tc>, window_params = [{transform_indices = @transform_0, window_bounds = array<i64: 16, 16>}, {pipeline_mode = #tpu.pipeline_mode<synchronous>, transform_indices = @transform_1, window_bounds = array<i64: 16, 32>}, {transform_indices = @transform_2, window_bounds = array<i64: 1, 32, 32>}, {transform_indices = @transform_3, window_bounds = array<i64: 1, 1, 32>}, {transform_indices = @transform_4, window_bounds = array<i64: 1, 32, 32>}, {transform_indices = @transform_5, window_bounds = array<i64: 1, 1, 32>}, {transform_indices = @transform_6, window_bounds = array<i64: 1, 1, 32>}, {transform_indices = @transform_7, window_bounds = array<i64: 1, 1, 32>}, {pipeline_mode = #tpu.pipeline_mode<synchronous>, transform_indices = @transform_8, window_bounds = array<i64: 8, 16>}, {pipeline_mode = #tpu.pipeline_mode<synchronous>, transform_indices = @transform_9, window_bounds = array<i64: 16, 96>}, {pipeline_mode = #tpu.pipeline_mode<synchronous>, transform_indices = @transform_10, window_bounds = array<i64: 8, 96>}]} {
    %c0_i32 = arith.constant 0 : i32
    %0 = arith.cmpi eq, %arg0, %c0_i32 : i32
    %c0_i32_0 = arith.constant 0 : i32
    %1 = arith.cmpi eq, %arg1, %c0_i32_0 : i32
    %2 = arith.andi %0, %1 : i1
    %3 = arith.extui %2 : i1 to i32
    %c0_i32_1 = arith.constant 0 : i32
    %4 = arith.cmpi ne, %3, %c0_i32_1 : i32
    scf.if %4 {
      %c0_12 = arith.constant 0 : index
      %c0_13 = arith.constant 0 : index
      %21 = vector.load %arg3[%c0_12, %c0_13] : memref<16x32xf32, #tpu.memory_space<vmem>>, vector<16x32xf32>
      %c0_14 = arith.constant 0 : index
      %c0_15 = arith.constant 0 : index
      %22 = vector.load %arg14[%c0_14, %c0_15] : memref<16x32xf32, #tpu.memory_space<vmem>>, vector<16x32xf32>
      tpu.vector_store %arg14[%c0_14, %c0_15], %21 {strides = array<i32>} : memref<16x32xf32, #tpu.memory_space<vmem>>, vector<16x32xf32>,
    } else {
    }
    %c0_i32_2 = arith.constant 0 : i32
    %5 = arith.cmpi eq, %arg1, %c0_i32_2 : i32
    %6 = arith.extui %5 : i1 to i32
    %c0_i32_3 = arith.constant 0 : i32
    %7 = arith.cmpi ne, %6, %c0_i32_3 : i32
    scf.if %7 {
      %cst_12 = arith.constant 0.000000e+00 : f32
      %21 = vector.broadcast %cst_12 : f32 to vector<16x32xf32>
      %c0_13 = arith.constant 0 : index
      %c0_14 = arith.constant 0 : index
      %22 = vector.load %arg13[%c0_13, %c0_14] : memref<16x32xf32, #tpu.memory_space<vmem>>, vector<16x32xf32>
      tpu.vector_store %arg13[%c0_13, %c0_14], %21 {strides = array<i32>} : memref<16x32xf32, #tpu.memory_space<vmem>>, vector<16x32xf32>,
    } else {
    }
    %c16_i32 = arith.constant 16 : i32
    %8 = arith.muli %arg1, %c16_i32 : i32
    %9 = tpu.assume_multiple %8, 16 : i32
    %10 = arith.index_cast %9 : i32 to index
    %c0 = arith.constant 0 : index
    %11 = vector.load %arg14[%10, %c0] : memref<16x32xf32, #tpu.memory_space<vmem>>, vector<16x32xf32>
    %c0_4 = arith.constant 0 : index
    %c0_5 = arith.constant 0 : index
    %12 = vector.load %arg13[%c0_4, %c0_5] : memref<16x32xf32, #tpu.memory_space<vmem>>, vector<16x32xf32>
    %c0_6 = arith.constant 0 : index
    %c0_7 = arith.constant 0 : index
    %13 = vector.load %arg2[%c0_6, %c0_7] : memref<16x16xbf16, #tpu.memory_space<vmem>>, vector<16x16xbf16>
    %14 = arith.truncf %11 : vector<16x32xf32> to vector<16x32xbf16>
    %cst = arith.constant dense<0.000000e+00> : vector<16x32xf32>
    %15 = tpu.matmul %13, %14, %cst {dimension_numbers = #tpu.dot_dimension_numbers<[1], [0], [0], [1], [0, 0, 1, 1], [], []>} : vector<16x16xbf16>, vector<16x32xbf16>, vector<16x32xf32> -> vector<16x32xf32>
    %16 = arith.addf %12, %15 : vector<16x32xf32>
    %c0_8 = arith.constant 0 : index
    %c0_9 = arith.constant 0 : index
    %17 = vector.load %arg13[%c0_8, %c0_9] : memref<16x32xf32, #tpu.memory_space<vmem>>, vector<16x32xf32>
    tpu.vector_store %arg13[%c0_8, %c0_9], %16 {strides = array<i32>} : memref<16x32xf32, #tpu.memory_space<vmem>>, vector<16x32xf32>,
    %c0_i32_10 = arith.constant 0 : i32
    %18 = arith.cmpi eq, %arg1, %c0_i32_10 : i32
    %19 = arith.extui %18 : i1 to i32
    %c0_i32_11 = arith.constant 0 : i32
    %20 = arith.cmpi ne, %19, %c0_i32_11 : i32
    scf.if %20 {
      %c0_12 = arith.constant 0 : index
      %c0_13 = arith.constant 0 : index
      %21 = vector.load %arg14[%c0_12, %c0_13] : memref<16x32xf32, #tpu.memory_space<vmem>>, vector<16x32xf32>
      %c0_14 = arith.constant 0 : index
      %c0_15 = arith.constant 0 : index
      %22 = vector.load %arg13[%c0_14, %c0_15] : memref<16x32xf32, #tpu.memory_space<vmem>>, vector<16x32xf32>
      %23 = arith.addf %22, %21 : vector<16x32xf32>
      %c0_16 = arith.constant 0 : index
      %c0_17 = arith.constant 0 : index
      %c0_18 = arith.constant 0 : index
      %24 = vector.load %arg4[%c0_16, %c0_17, %c0_18] : memref<1x32x32xf32, #tpu.memory_space<vmem>>, vector<1x32x32xf32>
      %25 = vector.shape_cast %24 : vector<1x32x32xf32> to vector<32x32xf32>
      %cst_19 = arith.constant dense<0.000000e+00> : vector<16x32xf32>
      %26 = tpu.matmul %23, %25, %cst_19 {dimension_numbers = #tpu.dot_dimension_numbers<[1], [0], [0], [1], [0, 0, 1, 1], [], []>} : vector<16x32xf32>, vector<32x32xf32>, vector<16x32xf32> -> vector<16x32xf32>
      %c0_20 = arith.constant 0 : index
      %c0_21 = arith.constant 0 : index
      %c0_22 = arith.constant 0 : index
      %27 = vector.load %arg5[%c0_20, %c0_21, %c0_22] : memref<1x1x32xf32, #tpu.memory_space<vmem>>, vector<1x1x32xf32>
      %28 = vector.shape_cast %27 : vector<1x1x32xf32> to vector<1x32xf32>
      %29 = vector.broadcast %28 : vector<1x32xf32> to vector<16x32xf32>
      %30 = arith.addf %26, %29 : vector<16x32xf32>
      %cst_23 = arith.constant 0.000000e+00 : f32
      %31 = vector.broadcast %cst_23 : f32 to vector<16x32xf32>
      %32 = arith.maximumf %30, %31 : vector<16x32xf32>
      %c0_24 = arith.constant 0 : index
      %c0_25 = arith.constant 0 : index
      %c0_26 = arith.constant 0 : index
      %33 = vector.load %arg6[%c0_24, %c0_25, %c0_26] : memref<1x32x32xf32, #tpu.memory_space<vmem>>, vector<1x32x32xf32>
      %34 = vector.shape_cast %33 : vector<1x32x32xf32> to vector<32x32xf32>
      %cst_27 = arith.constant dense<0.000000e+00> : vector<16x32xf32>
      %35 = tpu.matmul %32, %34, %cst_27 {dimension_numbers = #tpu.dot_dimension_numbers<[1], [0], [0], [1], [0, 0, 1, 1], [], []>} : vector<16x32xf32>, vector<32x32xf32>, vector<16x32xf32> -> vector<16x32xf32>
      %c0_28 = arith.constant 0 : index
      %c0_29 = arith.constant 0 : index
      %c0_30 = arith.constant 0 : index
      %36 = vector.load %arg7[%c0_28, %c0_29, %c0_30] : memref<1x1x32xf32, #tpu.memory_space<vmem>>, vector<1x1x32xf32>
      %37 = vector.shape_cast %36 : vector<1x1x32xf32> to vector<1x32xf32>
      %38 = vector.broadcast %37 : vector<1x32xf32> to vector<16x32xf32>
      %39 = arith.addf %35, %38 : vector<16x32xf32>
      %cst_31 = arith.constant 0.000000e+00 : f32
      %40 = vector.broadcast %cst_31 : f32 to vector<16x32xf32>
      %41 = arith.maximumf %39, %40 : vector<16x32xf32>
      %c0_32 = arith.constant 0 : index
      %c0_33 = arith.constant 0 : index
      %c0_34 = arith.constant 0 : index
      %42 = vector.load %arg8[%c0_32, %c0_33, %c0_34] : memref<1x1x32xf32, #tpu.memory_space<vmem>>, vector<1x1x32xf32>
      %43 = vector.shape_cast %42 : vector<1x1x32xf32> to vector<1x32xf32>
      %44 = vector.broadcast %43 : vector<1x32xf32> to vector<16x32xf32>
      %45 = arith.mulf %41, %44 : vector<16x32xf32>
      %c0_35 = arith.constant 0 : index
      %c0_36 = arith.constant 0 : index
      %c0_37 = arith.constant 0 : index
      %46 = vector.load %arg9[%c0_35, %c0_36, %c0_37] : memref<1x1x32xf32, #tpu.memory_space<vmem>>, vector<1x1x32xf32>
      %47 = vector.shape_cast %46 : vector<1x1x32xf32> to vector<1x32xf32>
      %48 = vector.broadcast %47 : vector<1x32xf32> to vector<16x32xf32>
      %49 = arith.addf %45, %48 : vector<16x32xf32>
      %c0_38 = arith.constant 0 : index
      %c0_39 = arith.constant 0 : index
      %50 = vector.load %arg14[%c0_38, %c0_39] : memref<16x32xf32, #tpu.memory_space<vmem>>, vector<16x32xf32>
      tpu.vector_store %arg14[%c0_38, %c0_39], %49 {strides = array<i32>} : memref<16x32xf32, #tpu.memory_space<vmem>>, vector<16x32xf32>,
      %c0_40 = arith.constant 0 : index
      %c0_41 = arith.constant 0 : index
      %51 = vector.load %arg10[%c0_40, %c0_41] : memref<8x16xf32, #tpu.memory_space<vmem>>, vector<8x16xf32>
      %cst_42 = arith.constant dense<0.000000e+00> : vector<8x32xf32>
      %52 = tpu.matmul %51, %49, %cst_42 {dimension_numbers = #tpu.dot_dimension_numbers<[1], [0], [0], [1], [0, 0, 1, 1], [], []>} : vector<8x16xf32>, vector<16x32xf32>, vector<8x32xf32> -> vector<8x32xf32>
      %c0_i32_43 = arith.constant 0 : i32
      %53 = arith.cmpi eq, %arg0, %c0_i32_43 : i32
      %54 = arith.extui %53 : i1 to i32
      %c0_i32_44 = arith.constant 0 : i32
      %55 = arith.cmpi ne, %54, %c0_i32_44 : i32
      scf.if %55 {
        %c0_47 = arith.constant 0 : index
        %c0_48 = arith.constant 0 : index
        %62 = vector.load %arg11[%c0_47, %c0_48] : memref<16x96xf32, #tpu.memory_space<vmem>>, vector<16x32xf32>
        tpu.vector_store %arg11[%c0_47, %c0_48], %49 {strides = array<i32>} : memref<16x96xf32, #tpu.memory_space<vmem>>, vector<16x32xf32>,
        %c0_49 = arith.constant 0 : index
        %c0_50 = arith.constant 0 : index
        %63 = vector.load %arg12[%c0_49, %c0_50] : memref<8x96xf32, #tpu.memory_space<vmem>>, vector<8x32xf32>
        tpu.vector_store %arg12[%c0_49, %c0_50], %52 {strides = array<i32>} : memref<8x96xf32, #tpu.memory_space<vmem>>, vector<8x32xf32>,
      } else {
      }
      %c1_i32 = arith.constant 1 : i32
      %56 = arith.cmpi eq, %arg0, %c1_i32 : i32
      %57 = arith.extui %56 : i1 to i32
      %c0_i32_45 = arith.constant 0 : i32
      %58 = arith.cmpi ne, %57, %c0_i32_45 : i32
      scf.if %58 {
        %c0_47 = arith.constant 0 : index
        %c32 = arith.constant 32 : index
        %62 = vector.load %arg11[%c0_47, %c32] : memref<16x96xf32, #tpu.memory_space<vmem>>, vector<16x32xf32>
        tpu.vector_store %arg11[%c0_47, %c32], %49 {strides = array<i32>} : memref<16x96xf32, #tpu.memory_space<vmem>>, vector<16x32xf32>,
        %c0_48 = arith.constant 0 : index
        %c32_49 = arith.constant 32 : index
        %63 = vector.load %arg12[%c0_48, %c32_49] : memref<8x96xf32, #tpu.memory_space<vmem>>, vector<8x32xf32>
        tpu.vector_store %arg12[%c0_48, %c32_49], %52 {strides = array<i32>} : memref<8x96xf32, #tpu.memory_space<vmem>>, vector<8x32xf32>,
      } else {
      }
      %c2_i32 = arith.constant 2 : i32
      %59 = arith.cmpi eq, %arg0, %c2_i32 : i32
      %60 = arith.extui %59 : i1 to i32
      %c0_i32_46 = arith.constant 0 : i32
      %61 = arith.cmpi ne, %60, %c0_i32_46 : i32
      scf.if %61 {
        %c0_47 = arith.constant 0 : index
        %c64 = arith.constant 64 : index
        %62 = vector.load %arg11[%c0_47, %c64] : memref<16x96xf32, #tpu.memory_space<vmem>>, vector<16x32xf32>
        tpu.vector_store %arg11[%c0_47, %c64], %49 {strides = array<i32>} : memref<16x96xf32, #tpu.memory_space<vmem>>, vector<16x32xf32>,
        %c0_48 = arith.constant 0 : index
        %c64_49 = arith.constant 64 : index
        %63 = vector.load %arg12[%c0_48, %c64_49] : memref<8x96xf32, #tpu.memory_space<vmem>>, vector<8x32xf32>
        tpu.vector_store %arg12[%c0_48, %c64_49], %52 {strides = array<i32>} : memref<8x96xf32, #tpu.memory_space<vmem>>, vector<8x32xf32>,
      } else {
      }
    } else {
    }
    return
  }
  func.func @transform_0(%arg0: i32, %arg1: i32) -> (i32, i32) {
    %c0_i32 = arith.constant 0 : i32
    %c0_i32_0 = arith.constant 0 : i32
    return %c0_i32, %arg1 : i32, i32
  }
  func.func @transform_1(%arg0: i32, %arg1: i32) -> (i32, i32) {
    %c0_i32 = arith.constant 0 : i32
    %c0_i32_0 = arith.constant 0 : i32
    %c0_i32_1 = arith.constant 0 : i32
    return %c0_i32, %c0_i32_0 : i32, i32
  }
  func.func @transform_2(%arg0: i32, %arg1: i32) -> (i32, i32, i32) {
    %c0_i32 = arith.constant 0 : i32
    %c0_i32_0 = arith.constant 0 : i32
    %c0_i32_1 = arith.constant 0 : i32
    return %arg0, %c0_i32, %c0_i32_0 : i32, i32, i32
  }
  func.func @transform_3(%arg0: i32, %arg1: i32) -> (i32, i32, i32) {
    %c0_i32 = arith.constant 0 : i32
    %c0_i32_0 = arith.constant 0 : i32
    %c0_i32_1 = arith.constant 0 : i32
    return %arg0, %c0_i32, %c0_i32_0 : i32, i32, i32
  }
  func.func @transform_4(%arg0: i32, %arg1: i32) -> (i32, i32, i32) {
    %c0_i32 = arith.constant 0 : i32
    %c0_i32_0 = arith.constant 0 : i32
    %c0_i32_1 = arith.constant 0 : i32
    return %arg0, %c0_i32, %c0_i32_0 : i32, i32, i32
  }
  func.func @transform_5(%arg0: i32, %arg1: i32) -> (i32, i32, i32) {
    %c0_i32 = arith.constant 0 : i32
    %c0_i32_0 = arith.constant 0 : i32
    %c0_i32_1 = arith.constant 0 : i32
    return %arg0, %c0_i32, %c0_i32_0 : i32, i32, i32
  }
  func.func @transform_6(%arg0: i32, %arg1: i32) -> (i32, i32, i32) {
    %c0_i32 = arith.constant 0 : i32
    %c0_i32_0 = arith.constant 0 : i32
    %c0_i32_1 = arith.constant 0 : i32
    return %arg0, %c0_i32, %c0_i32_0 : i32, i32, i32
  }
  func.func @transform_7(%arg0: i32, %arg1: i32) -> (i32, i32, i32) {
    %c0_i32 = arith.constant 0 : i32
    %c0_i32_0 = arith.constant 0 : i32
    %c0_i32_1 = arith.constant 0 : i32
    return %arg0, %c0_i32, %c0_i32_0 : i32, i32, i32
  }
  func.func @transform_8(%arg0: i32, %arg1: i32) -> (i32, i32) {
    %c0_i32 = arith.constant 0 : i32
    %c0_i32_0 = arith.constant 0 : i32
    %c0_i32_1 = arith.constant 0 : i32
    return %c0_i32, %c0_i32_0 : i32, i32
  }
  func.func @transform_9(%arg0: i32, %arg1: i32) -> (i32, i32) {
    %c0_i32 = arith.constant 0 : i32
    %c0_i32_0 = arith.constant 0 : i32
    %c0_i32_1 = arith.constant 0 : i32
    return %c0_i32, %c0_i32_0 : i32, i32
  }
  func.func @transform_10(%arg0: i32, %arg1: i32) -> (i32, i32) {
    %c0_i32 = arith.constant 0 : i32
    %c0_i32_0 = arith.constant 0 : i32
    %c0_i32_1 = arith.constant 0 : i32
    return %c0_i32, %c0_i32_0 : i32, i32
  }
}

</mosaic_0001>

<llo_original>
// kernel: tpu_custom_call.1
$region0: #{tpu_custom_call.1}
  #allocation0 [shape = 'u32[]', space=smem, size = 0x4, offset = 0x4, fixed_abs, tag = 'smem constant byte address 0x4 - core index']
  #allocation1 [shape = 'u32[72,128]{1,0:T(1,128)}', space=vmem, size = 0x9000, scoped, tag = 'internal scratch']
  #allocation2 [shape = 'f32[16,32]{1,0:T(8,128)}', space=vmem, size = 0x2000, scoped, tag = 'scratch operand']
  #allocation3 [shape = 'f32[16,32]{1,0:T(8,128)}', space=vmem, size = 0x2000, scoped, tag = 'scratch operand']
  %s0 = inlined_call_operand.hbm [shape: bf16[16,16], index: 0, kind: input, shape index: {}]
  %s1 = inlined_call_operand.hbm [shape: f32[16,32], index: 1, kind: input, shape index: {}]
  %s2 = inlined_call_operand.hbm [shape: f32[3,32,32], index: 2, kind: input, shape index: {}]
  %s3 = inlined_call_operand.hbm [shape: f32[3,1,32], index: 3, kind: input, shape index: {}]
  %s4 = inlined_call_operand.hbm [shape: f32[3,32,32], index: 4, kind: input, shape index: {}]
  %s5 = inlined_call_operand.vmem [shape: f32[3,1,32], index: 5, kind: input, shape index: {}]
  %s6 = inlined_call_operand.hbm [shape: f32[3,1,32], index: 6, kind: input, shape index: {}]
  %s7 = inlined_call_operand.vmem [shape: f32[3,1,32], index: 7, kind: input, shape index: {}]
  %s8 = inlined_call_operand.hbm [shape: f32[8,16], index: 8, kind: input, shape index: {}]
  %s9 = inlined_call_operand.hbm [shape: f32[16,96], index: 9, kind: output, shape index: {0}]
  %s10 = inlined_call_operand.hbm [shape: f32[8,96], index: 10, kind: output, shape index: {1}]
  %11 = xla_tuple %s9, %s10
  %s12 = sld [smem:[#allocation0]]
  $region129: #{tpu_custom_call.1} parent=0
    _
  %s14 = ssub.s32 1, %s12
  %s15 = scalar_select 0, %s14, %s12
  $region1: #{tpu_custom_call.1} parent=0
    #allocation4 [shape = 'u8[4096]{0}', space=vmem, size = 0x1000, scoped, tag = 'input window, operand 0, single buffered']
    #allocation5 [shape = 's32[2]{0}', space=sflag, size = 0x8, scoped, tag = 'scoped memory for tpu_custom_call.1']
    #allocation6 [shape = 's32[2]{0}', space=sflag, size = 0x8, scoped, tag = 'scoped memory for tpu_custom_call.1']
    #allocation7 [shape = 'u8[8192]{0}', space=vmem, size = 0x2000, scoped, tag = 'input window, operand 1, single buffered']
    #allocation8 [shape = 's32[1]{0}', space=sflag, size = 0x4, scoped, tag = 'scoped memory for tpu_custom_call.1']
    #allocation9 [shape = 'u8[32768]{0}', space=vmem, size = 0x8000, scoped, tag = 'input window, operand 2']
    #allocation10 [shape = 'u8[1024]{0}', space=vmem, size = 0x400, scoped, tag = 'input window, operand 3']
    #allocation11 [shape = 'u8[32768]{0}', space=vmem, size = 0x8000, scoped, tag = 'input window, operand 4']
    #allocation12 [shape = 'u8[1024]{0}', space=vmem, size = 0x400, scoped, tag = 'input window, operand 6']
    #allocation13 [shape = 'u8[4096]{0}', space=vmem, size = 0x1000, scoped, tag = 'input window, operand 8, single buffered']
    #allocation14 [shape = 'u8[8192]{0}', space=vmem, size = 0x2000, scoped, tag = 'output window, operand 0, single buffered']
    #allocation15 [shape = 'u8[4096]{0}', space=vmem, size = 0x1000, scoped, tag = 'output window, operand 1, single buffered']
    #allocation16 [shape = 's32[1]{0}', space=sflag, size = 0x4, scoped, tag = 'scoped memory for tpu_custom_call.1']
    %16 = vsyncpa [#allocation5], 0
    %17 = vsyncpa [#allocation8], 0
    %18 = vsyncpa [#allocation6], 0
    %19 = vsyncpa [#allocation16], 0
    loop: start=0, step=1, limit=5
    $region2: #{tpu_custom_call.1} parent=1 // loop_pre_header
      _
    $region3: #{tpu_custom_call.1} parent=1 // loop_header
      %s21 = sphi 0, %s25
      %p22 = scmp.ge.s32.totalorder %s21, 5
      %s28 = sphi 0, %s40
      %s29 = sphi 0, %s36
      %s30 = sphi 0, %s28
      %s31 = sphi 0, %s29
      %s32 = sphi 0, %s30
      %s33 = sphi 0, %s31
      %s43 = sphi 0, %s45
      %s46 = sphi 0, %s43
      %s47 = sphi 0, %s46
      %s63 = sphi 0, %s47
      %s67 = sphi 0, %s67
      %s69 = sphi 0, %s67
      %s70 = sphi 0, %s69
      %s84 = sphi 0, %s70
      %s90 = sphi 0, %s92
      %s93 = sphi 0, %s90
      %s94 = sphi 0, %s93
      %s110 = sphi 0, %s94
      %s116 = sphi 0, %s118
      %s119 = sphi 0, %s116
      %s120 = sphi 0, %s119
      %s136 = sphi 0, %s120
      %s142 = sphi 0, %s144
      %s145 = sphi 0, %s142
      %s146 = sphi 0, %s145
      %s162 = sphi 0, %s146
      %s168 = sphi 0, %s170
      %s171 = sphi 0, %s168
      %s172 = sphi 0, %s171
      %s188 = sphi 0, %s172
      %s194 = sphi 0, %s196
      %s197 = sphi 0, %s194
      %s198 = sphi 0, %s197
      %s214 = sphi 0, %s198
      %s220 = sphi 0, %s222
      %s223 = sphi 0, %s220
      %s224 = sphi 0, %s223
      %s240 = sphi 0, %s224
      %s244 = sphi 0, %s244
      %s246 = sphi 0, %s244
      %s247 = sphi 0, %s246
      %s261 = sphi 0, %s247
      %s265 = sphi 0, %s265
      %s267 = sphi 0, %s265
      %s268 = sphi 0, %s267
      %s282 = sphi 0, %s268
      %s286 = sphi 0, %s286
      %s288 = sphi 0, %s286
      %s289 = sphi 0, %s288
      %s303 = sphi 0, %s289
    $region4: #{tpu_custom_call.1} parent=1 // loop_header_branch
      %24 = sbr.rel (%p22) target = $region8
    $region5: #{tpu_custom_call.1} parent=1 // loop_body
      %s26 = ssub.s32 %s21, 1
      %s27 = ssub.s32 %s21, 2
      %s34 = sadd.s32 1, %s29
      %p35 = scmp.ge.s32.totalorder %s34, 1
      %s36 = scalar_select %p35, 0, %s34
      %s37 = sadd.s32 1, %s28
      %s38 = scalar_select %p35, %s37, %s28
      %p39 = scmp.ge.s32.totalorder %s38, 3
      %s40 = scalar_select %p39, 0, %s38
      %s41 = ssub.s32 %s29, %s36
      %p42 = scmp.eq.s32.totalorder %s41, 0
      %s44 = sadd.s32 %s43, 1
      %s45 = scalar_select %p42, %s43, %s44
      %p48 = pneg %p42
      %p49 = scmp.eq.s32.totalorder %s21, 2
      %p50 = por %p48, %p49
      %p51 = scmp.ne.s32.totalorder %s43, %s46
      %p52 = scmp.eq.s32.totalorder %s21, 0
      %p53 = por %p51, %p52
      %p54 = scmp.ne.s32.totalorder %s43, %s46
      %p55 = scmp.eq.s32.totalorder %s26, 2
      %p56 = por %p54, %p55
      %p57 = scmp.ne.s32.totalorder %s46, %s47
      %p58 = scmp.eq.s32.totalorder %s26, 0
      %p59 = por %p57, %p58
      %p60 = scmp.ne.s32.totalorder %s46, %s47
      %p61 = scmp.eq.s32.totalorder %s27, 2
      %p62 = por %p60, %p61
      %p64 = scmp.ne.s32.totalorder %s47, %s63
      %p65 = scmp.eq.s32.totalorder %s27, 0
      %p66 = por %p64, %p65
      %s68 = sadd.s32 %s67, 1
      %p71 = scmp.eq.s32.totalorder %s21, 2
      %p72 = scmp.ne.s32.totalorder %s67, %s69
      %p73 = scmp.eq.s32.totalorder %s21, 0
      %p74 = por %p72, %p73
      %p75 = scmp.ne.s32.totalorder %s67, %s69
      %p76 = scmp.eq.s32.totalorder %s26, 2
      %p77 = por %p75, %p76
      %p78 = scmp.ne.s32.totalorder %s69, %s70
      %p79 = scmp.eq.s32.totalorder %s26, 0
      %p80 = por %p78, %p79
      %p81 = scmp.ne.s32.totalorder %s69, %s70
      %p82 = scmp.eq.s32.totalorder %s27, 2
      %p83 = por %p81, %p82
      %p85 = scmp.ne.s32.totalorder %s70, %s84
      %p86 = scmp.eq.s32.totalorder %s27, 0
      %p87 = por %p85, %p86
      %s88 = ssub.s32 %s28, %s40
      %p89 = scmp.eq.s32.totalorder %s88, 0
      %s91 = sadd.s32 %s90, 1
      %s92 = scalar_select %p89, %s90, %s91
      %p95 = pneg %p89
      %p96 = scmp.eq.s32.totalorder %s21, 2
      %p97 = por %p95, %p96
      %p98 = scmp.ne.s32.totalorder %s90, %s93
      %p99 = scmp.eq.s32.totalorder %s21, 0
      %p100 = por %p98, %p99
      %p101 = scmp.ne.s32.totalorder %s90, %s93
      %p102 = scmp.eq.s32.totalorder %s26, 2
      %p103 = por %p101, %p102
      %p104 = scmp.ne.s32.totalorder %s93, %s94
      %p105 = scmp.eq.s32.totalorder %s26, 0
      %p106 = por %p104, %p105
      %p107 = scmp.ne.s32.totalorder %s93, %s94
      %p108 = scmp.eq.s32.totalorder %s27, 2
      %p109 = por %p107, %p108
      %p111 = scmp.ne.s32.totalorder %s94, %s110
      %p112 = scmp.eq.s32.totalorder %s27, 0
      %p113 = por %p111, %p112
      %s114 = ssub.s32 %s28, %s40
      %p115 = scmp.eq.s32.totalorder %s114, 0
      %s117 = sadd.s32 %s116, 1
      %s118 = scalar_select %p115, %s116, %s117
      %p121 = pneg %p115
      %p122 = scmp.eq.s32.totalorder %s21, 2
      %p123 = por %p121, %p122
      %p124 = scmp.ne.s32.totalorder %s116, %s119
      %p125 = scmp.eq.s32.totalorder %s21, 0
      %p126 = por %p124, %p125
      %p127 = scmp.ne.s32.totalorder %s116, %s119
      %p128 = scmp.eq.s32.totalorder %s26, 2
      %p129 = por %p127, %p128
      %p130 = scmp.ne.s32.totalorder %s119, %s120
      %p131 = scmp.eq.s32.totalorder %s26, 0
      %p132 = por %p130, %p131
      %p133 = scmp.ne.s32.totalorder %s119, %s120
      %p134 = scmp.eq.s32.totalorder %s27, 2
      %p135 = por %p133, %p134
      %p137 = scmp.ne.s32.totalorder %s120, %s136
      %p138 = scmp.eq.s32.totalorder %s27, 0
      %p139 = por %p137, %p138
      %s140 = ssub.s32 %s28, %s40
      %p141 = scmp.eq.s32.totalorder %s140, 0
      %s143 = sadd.s32 %s142, 1
      %s144 = scalar_select %p141, %s142, %s143
      %p147 = pneg %p141
      %p148 = scmp.eq.s32.totalorder %s21, 2
      %p149 = por %p147, %p148
      %p150 = scmp.ne.s32.totalorder %s142, %s145
      %p151 = scmp.eq.s32.totalorder %s21, 0
      %p152 = por %p150, %p151
      %p153 = scmp.ne.s32.totalorder %s142, %s145
      %p154 = scmp.eq.s32.totalorder %s26, 2
      %p155 = por %p153, %p154
      %p156 = scmp.ne.s32.totalorder %s145, %s146
      %p157 = scmp.eq.s32.totalorder %s26, 0
      %p158 = por %p156, %p157
      %p159 = scmp.ne.s32.totalorder %s145, %s146
      %p160 = scmp.eq.s32.totalorder %s27, 2
      %p161 = por %p159, %p160
      %p163 = scmp.ne.s32.totalorder %s146, %s162
      %p164 = scmp.eq.s32.totalorder %s27, 0
      %p165 = por %p163, %p164
      %s166 = ssub.s32 %s28, %s40
      %p167 = scmp.eq.s32.totalorder %s166, 0
      %s169 = sadd.s32 %s168, 1
      %s170 = scalar_select %p167, %s168, %s169
      %p173 = pneg %p167
      %p174 = scmp.eq.s32.totalorder %s21, 2
      %p175 = por %p173, %p174
      %p176 = scmp.ne.s32.totalorder %s168, %s171
      %p177 = scmp.eq.s32.totalorder %s21, 0
      %p178 = por %p176, %p177
      %p179 = scmp.ne.s32.totalorder %s168, %s171
      %p180 = scmp.eq.s32.totalorder %s26, 2
      %p181 = por %p179, %p180
      %p182 = scmp.ne.s32.totalorder %s171, %s172
      %p183 = scmp.eq.s32.totalorder %s26, 0
      %p184 = por %p182, %p183
      %p185 = scmp.ne.s32.totalorder %s171, %s172
      %p186 = scmp.eq.s32.totalorder %s27, 2
      %p187 = por %p185, %p186
      %p189 = scmp.ne.s32.totalorder %s172, %s188
      %p190 = scmp.eq.s32.totalorder %s27, 0
      %p191 = por %p189, %p190
      %s192 = ssub.s32 %s28, %s40
      %p193 = scmp.eq.s32.totalorder %s192, 0
      %s195 = sadd.s32 %s194, 1
      %s196 = scalar_select %p193, %s194, %s195
      %p199 = pneg %p193
      %p200 = scmp.eq.s32.totalorder %s21, 2
      %p201 = por %p199, %p200
      %p202 = scmp.ne.s32.totalorder %s194, %s197
      %p203 = scmp.eq.s32.totalorder %s21, 0
      %p204 = por %p202, %p203
      %p205 = scmp.ne.s32.totalorder %s194, %s197
      %p206 = scmp.eq.s32.totalorder %s26, 2
      %p207 = por %p205, %p206
      %p208 = scmp.ne.s32.totalorder %s197, %s198
      %p209 = scmp.eq.s32.totalorder %s26, 0
      %p210 = por %p208, %p209
      %p211 = scmp.ne.s32.totalorder %s197, %s198
      %p212 = scmp.eq.s32.totalorder %s27, 2
      %p213 = por %p211, %p212
      %p215 = scmp.ne.s32.totalorder %s198, %s214
      %p216 = scmp.eq.s32.totalorder %s27, 0
      %p217 = por %p215, %p216
      %s218 = ssub.s32 %s28, %s40
      %p219 = scmp.eq.s32.totalorder %s218, 0
      %s221 = sadd.s32 %s220, 1
      %s222 = scalar_select %p219, %s220, %s221
      %p225 = pneg %p219
      %p226 = scmp.eq.s32.totalorder %s21, 2
      %p227 = por %p225, %p226
      %p228 = scmp.ne.s32.totalorder %s220, %s223
      %p229 = scmp.eq.s32.totalorder %s21, 0
      %p230 = por %p228, %p229
      %p231 = scmp.ne.s32.totalorder %s220, %s223
      %p232 = scmp.eq.s32.totalorder %s26, 2
      %p233 = por %p231, %p232
      %p234 = scmp.ne.s32.totalorder %s223, %s224
      %p235 = scmp.eq.s32.totalorder %s26, 0
      %p236 = por %p234, %p235
      %p237 = scmp.ne.s32.totalorder %s223, %s224
      %p238 = scmp.eq.s32.totalorder %s27, 2
      %p239 = por %p237, %p238
      %p241 = scmp.ne.s32.totalorder %s224, %s240
      %p242 = scmp.eq.s32.totalorder %s27, 0
      %p243 = por %p241, %p242
      %s245 = sadd.s32 %s244, 1
      %p248 = scmp.eq.s32.totalorder %s21, 2
      %p249 = scmp.ne.s32.totalorder %s244, %s246
      %p250 = scmp.eq.s32.totalorder %s21, 0
      %p251 = por %p249, %p250
      %p252 = scmp.ne.s32.totalorder %s244, %s246
      %p253 = scmp.eq.s32.totalorder %s26, 2
      %p254 = por %p252, %p253
      %p255 = scmp.ne.s32.totalorder %s246, %s247
      %p256 = scmp.eq.s32.totalorder %s26, 0
      %p257 = por %p255, %p256
      %p258 = scmp.ne.s32.totalorder %s246, %s247
      %p259 = scmp.eq.s32.totalorder %s27, 2
      %p260 = por %p258, %p259
      %p262 = scmp.ne.s32.totalorder %s247, %s261
      %p263 = scmp.eq.s32.totalorder %s27, 0
      %p264 = por %p262, %p263
      %s266 = sadd.s32 %s265, 1
      %p269 = scmp.eq.s32.totalorder %s21, 2
      %p270 = scmp.ne.s32.totalorder %s265, %s267
      %p271 = scmp.eq.s32.totalorder %s21, 0
      %p272 = por %p270, %p271
      %p273 = scmp.ne.s32.totalorder %s265, %s267
      %p274 = scmp.eq.s32.totalorder %s26, 2
      %p275 = por %p273, %p274
      %p276 = scmp.ne.s32.totalorder %s267, %s268
      %p277 = scmp.eq.s32.totalorder %s26, 0
      %p278 = por %p276, %p277
      %p279 = scmp.ne.s32.totalorder %s267, %s268
      %p280 = scmp.eq.s32.totalorder %s27, 2
      %p281 = por %p279, %p280
      %p283 = scmp.ne.s32.totalorder %s268, %s282
      %p284 = scmp.eq.s32.totalorder %s27, 0
      %p285 = por %p283, %p284
      %s287 = sadd.s32 %s286, 1
      %p290 = scmp.eq.s32.totalorder %s21, 2
      %p291 = scmp.ne.s32.totalorder %s286, %s288
      %p292 = scmp.eq.s32.totalorder %s21, 0
      %p293 = por %p291, %p292
      %p294 = scmp.ne.s32.totalorder %s286, %s288
      %p295 = scmp.eq.s32.totalorder %s26, 2
      %p296 = por %p294, %p295
      %p297 = scmp.ne.s32.totalorder %s288, %s289
      %p298 = scmp.eq.s32.totalorder %s26, 0
      %p299 = por %p297, %p298
      %p300 = scmp.ne.s32.totalorder %s288, %s289
      %p301 = scmp.eq.s32.totalorder %s27, 2
      %p302 = por %p300, %p301
      %p304 = scmp.ne.s32.totalorder %s289, %s303
      %p305 = scmp.eq.s32.totalorder %s27, 0
      %p306 = por %p304, %p305
      %p307 = scmp.le.s32.totalorder 1, %s21
      %p308 = scmp.lt.s32.totalorder %s21, 4
      %p309 = pnand %p307, %p308
      %p310 = pneg %p309
      // Predicated region
      $region9: #{tpu_custom_call.1} parent=5 // pred_check
        _
      $region10: #{tpu_custom_call.1} parent=5 // pred_check_branch
        %312 = sbr.rel (%p309) target = $region12
      $region11: #{tpu_custom_call.1} parent=5 // pred_region
        %s313 = ssub.s32 %s21, 1
        // Predicated region
        $region13: #{tpu_custom_call.1} parent=11 // pred_check
          %p314 = pneg %p59
        $region14: #{tpu_custom_call.1} parent=11 // pred_check_branch
          %316 = sbr.rel (%p314) target = $region16
        $region15: #{tpu_custom_call.1} parent=11 // pred_region
          %318 = vsyncadd [#allocation5], 0
          %s319 = smul.addr %s31, 4
          %s320 = scalar_lea.hbm %s0, %s319
          %s321 = sshll.u32 %s320, 4
          %s322 = int_to_ptr.hbm [resolvable:$true] %s321
          %s323 = sshll.u32 [#allocation4], 4
          %s324 = int_to_ptr.vmem [resolvable:$true] %s323
          %329 = dma.hbm_to_vmem [thread:$0]  %s322, 128, %s324, [#allocation5], 64, 64, 4
        $region16: #{tpu_custom_call.1} parent=11 // pred_fallthru
          _
        // Predicated region
        $region17: #{tpu_custom_call.1} parent=11 // pred_check
          %p330 = pneg %p80
        $region18: #{tpu_custom_call.1} parent=11 // pred_check_branch
          %332 = sbr.rel (%p330) target = $region20
        $region19: #{tpu_custom_call.1} parent=11 // pred_region
          %334 = vsyncadd [#allocation8], 0
          %s335 = sshll.u32 %s1, 4
          %s336 = int_to_ptr.hbm [resolvable:$true] %s335
          %s337 = sshll.u32 [#allocation7], 4
          %s338 = int_to_ptr.vmem [resolvable:$true] %s337
          %343 = dma.hbm_to_vmem [thread:$0]  %s336, 256, %s338, [#allocation8], 128, 128, 8
        $region20: #{tpu_custom_call.1} parent=11 // pred_fallthru
          _
        // Predicated region
        $region21: #{tpu_custom_call.1} parent=11 // pred_check
          %p344 = pneg %p257
        $region22: #{tpu_custom_call.1} parent=11 // pred_check_branch
          %346 = sbr.rel (%p344) target = $region24
        $region23: #{tpu_custom_call.1} parent=11 // pred_region
          %348 = vsyncadd [#allocation8], 0
          %s350 = sshll.u32 %s8, 4
          %s351 = int_to_ptr.hbm [resolvable:$true] %s350
          %s352 = sshll.u32 [#allocation13], 4
          %s353 = int_to_ptr.vmem [resolvable:$true] %s352
          %355 = dma.hbm_to_vmem [thread:$0]  %s351, 128, %s353, [#allocation8]
        $region24: #{tpu_custom_call.1} parent=11 // pred_fallthru
          _
      $region12: #{tpu_custom_call.1} parent=5 // pred_fallthru
        _
      %p356 = scmp.lt.s32.totalorder %s21, 3
      // Predicated region
      $region25: #{tpu_custom_call.1} parent=5 // pred_check
        %p357 = pneg %p356
      $region26: #{tpu_custom_call.1} parent=5 // pred_check_branch
        %359 = sbr.rel (%p357) target = $region28
      $region27: #{tpu_custom_call.1} parent=5 // pred_region
        // Predicated region
        $region29: #{tpu_custom_call.1} parent=27 // pred_check
          %p360 = pneg %p100
        $region30: #{tpu_custom_call.1} parent=27 // pred_check_branch
          %362 = sbr.rel (%p360) target = $region32
        $region31: #{tpu_custom_call.1} parent=27 // pred_region
          %s363 = sand.u32 %s21, 1
          %s364 = scalar_lea.sflag [#allocation5], %s363
          %s365 = sand.u32 %s90, 1
          %s366 = smul.addr %s365, 32
          %s367 = scalar_lea.vmem [#allocation9], %s366
          %369 = vsyncadd %s364, 0
          %s370 = smul.addr %s28, 4
          %s371 = smul.addr %s370, 8
          %s372 = scalar_lea.hbm %s2, %s371
          %s373 = sshll.u32 %s372, 4
          %s374 = int_to_ptr.hbm [resolvable:$true] %s373
          %s375 = sshll.u32 %s367, 4
          %s376 = int_to_ptr.vmem [resolvable:$true] %s375
          %381 = dma.hbm_to_vmem [thread:$0]  %s374, 512, %s376, %s364, 128, 128, 8
        $region32: #{tpu_custom_call.1} parent=27 // pred_fallthru
          _
        // Predicated region
        $region33: #{tpu_custom_call.1} parent=27 // pred_check
          %p382 = pneg %p126
        $region34: #{tpu_custom_call.1} parent=27 // pred_check_branch
          %384 = sbr.rel (%p382) target = $region36
        $region35: #{tpu_custom_call.1} parent=27 // pred_region
          %s385 = sand.u32 %s21, 1
          %s386 = scalar_lea.sflag [#allocation5], %s385
          %s387 = sand.u32 %s116, 1
          %s388 = scalar_lea.vmem [#allocation10], %s387
          %390 = vsyncadd %s386, 0
          %s391 = scalar_lea.hbm %s3, %s28
          %s393 = sshll.u32 %s391, 4
          %s394 = int_to_ptr.hbm [resolvable:$true] %s393
          %s395 = sshll.u32 %s388, 4
          %s396 = int_to_ptr.vmem [resolvable:$true] %s395
          %398 = dma.hbm_to_vmem [thread:$0]  %s394, 16, %s396, %s386
        $region36: #{tpu_custom_call.1} parent=27 // pred_fallthru
          _
        // Predicated region
        $region37: #{tpu_custom_call.1} parent=27 // pred_check
          %p399 = pneg %p152
        $region38: #{tpu_custom_call.1} parent=27 // pred_check_branch
          %401 = sbr.rel (%p399) target = $region40
        $region39: #{tpu_custom_call.1} parent=27 // pred_region
          %s402 = sand.u32 %s21, 1
          %s403 = scalar_lea.sflag [#allocation5], %s402
          %s404 = sand.u32 %s142, 1
          %s405 = smul.addr %s404, 32
          %s406 = scalar_lea.vmem [#allocation11], %s405
          %408 = vsyncadd %s403, 0
          %s409 = smul.addr %s28, 4
          %s410 = smul.addr %s409, 8
          %s411 = scalar_lea.hbm %s4, %s410
          %s412 = sshll.u32 %s411, 4
          %s413 = int_to_ptr.hbm [resolvable:$true] %s412
          %s414 = sshll.u32 %s406, 4
          %s415 = int_to_ptr.vmem [resolvable:$true] %s414
          %420 = dma.hbm_to_vmem [thread:$0]  %s413, 512, %s415, %s403, 128, 128, 8
        $region40: #{tpu_custom_call.1} parent=27 // pred_fallthru
          _
        // Predicated region
        $region41: #{tpu_custom_call.1} parent=27 // pred_check
          %p421 = pneg %p178
        $region42: #{tpu_custom_call.1} parent=27 // pred_check_branch
          %423 = sbr.rel (%p421) target = $region44
        $region43: #{tpu_custom_call.1} parent=27 // pred_region
          %p424 = scmp.lt.s32.totalorder %s28, 2
          %s425 = scalar_select %p424, %s28, 2
          %s426 = scalar_lea.vmem %s5, %s425
        $region44: #{tpu_custom_call.1} parent=27 // pred_fallthru
          _
        // Predicated region
        $region45: #{tpu_custom_call.1} parent=27 // pred_check
          %p427 = pneg %p204
        $region46: #{tpu_custom_call.1} parent=27 // pred_check_branch
          %429 = sbr.rel (%p427) target = $region48
        $region47: #{tpu_custom_call.1} parent=27 // pred_region
          %s430 = sand.u32 %s21, 1
          %s431 = scalar_lea.sflag [#allocation5], %s430
          %s432 = sand.u32 %s194, 1
          %s433 = scalar_lea.vmem [#allocation12], %s432
          %435 = vsyncadd %s431, 0
          %s436 = scalar_lea.hbm %s6, %s28
          %s438 = sshll.u32 %s436, 4
          %s439 = int_to_ptr.hbm [resolvable:$true] %s438
          %s440 = sshll.u32 %s433, 4
          %s441 = int_to_ptr.vmem [resolvable:$true] %s440
          %443 = dma.hbm_to_vmem [thread:$0]  %s439, 16, %s441, %s431
        $region48: #{tpu_custom_call.1} parent=27 // pred_fallthru
          _
        // Predicated region
        $region49: #{tpu_custom_call.1} parent=27 // pred_check
          %p444 = pneg %p230
        $region50: #{tpu_custom_call.1} parent=27 // pred_check_branch
          %446 = sbr.rel (%p444) target = $region52
        $region51: #{tpu_custom_call.1} parent=27 // pred_region
          %p447 = scmp.lt.s32.totalorder %s28, 2
          %s448 = scalar_select %p447, %s28, 2
          %s449 = scalar_lea.vmem %s7, %s448
        $region52: #{tpu_custom_call.1} parent=27 // pred_fallthru
          _
      $region28: #{tpu_custom_call.1} parent=5 // pred_fallthru
        _
      %p450 = scmp.le.s32.totalorder 1, %s21
      %p451 = scmp.lt.s32.totalorder %s21, 4
      %p452 = pnand %p450, %p451
      %p453 = pneg %p452
      // Predicated region
      $region53: #{tpu_custom_call.1} parent=5 // pred_check
        _
      $region54: #{tpu_custom_call.1} parent=5 // pred_check_branch
        %455 = sbr.rel (%p452) target = $region56
      $region55: #{tpu_custom_call.1} parent=5 // pred_region
        %s456 = ssub.s32 %s21, 1
        // Predicated region
        $region57: #{tpu_custom_call.1} parent=55 // pred_check
          %p457 = pneg %p59
        $region58: #{tpu_custom_call.1} parent=55 // pred_check_branch
          %459 = sbr.rel (%p457) target = $region60
        $region59: #{tpu_custom_call.1} parent=55 // pred_region
          %461 = dma.done [#allocation5], 128
        $region60: #{tpu_custom_call.1} parent=55 // pred_fallthru
          _
        // Predicated region
        $region61: #{tpu_custom_call.1} parent=55 // pred_check
          %p462 = pneg %p80
        $region62: #{tpu_custom_call.1} parent=55 // pred_check_branch
          %464 = sbr.rel (%p462) target = $region64
        $region63: #{tpu_custom_call.1} parent=55 // pred_region
          %466 = dma.done [#allocation8], 256
        $region64: #{tpu_custom_call.1} parent=55 // pred_fallthru
          _
        %s467 = sand.u32 %s26, 1
        %s468 = scalar_lea.sflag [#allocation5], %s467
        %s469 = sand.u32 %s93, 1
        %s470 = smul.addr %s469, 32
        %s471 = scalar_lea.vmem [#allocation9], %s470
        // Predicated region
        $region65: #{tpu_custom_call.1} parent=55 // pred_check
          %p472 = pneg %p106
        $region66: #{tpu_custom_call.1} parent=55 // pred_check_branch
          %474 = sbr.rel (%p472) target = $region68
        $region67: #{tpu_custom_call.1} parent=55 // pred_region
          %476 = dma.done %s468, 512
        $region68: #{tpu_custom_call.1} parent=55 // pred_fallthru
          _
        %s477 = sand.u32 %s26, 1
        %s478 = scalar_lea.sflag [#allocation5], %s477
        %s479 = sand.u32 %s119, 1
        %s480 = scalar_lea.vmem [#allocation10], %s479
        // Predicated region
        $region69: #{tpu_custom_call.1} parent=55 // pred_check
          %p481 = pneg %p132
        $region70: #{tpu_custom_call.1} parent=55 // pred_check_branch
          %483 = sbr.rel (%p481) target = $region72
        $region71: #{tpu_custom_call.1} parent=55 // pred_region
          %485 = dma.done %s478, 16
        $region72: #{tpu_custom_call.1} parent=55 // pred_fallthru
          _
        %s486 = sand.u32 %s26, 1
        %s487 = scalar_lea.sflag [#allocation5], %s486
        %s488 = sand.u32 %s145, 1
        %s489 = smul.addr %s488, 32
        %s490 = scalar_lea.vmem [#allocation11], %s489
        // Predicated region
        $region73: #{tpu_custom_call.1} parent=55 // pred_check
          %p491 = pneg %p158
        $region74: #{tpu_custom_call.1} parent=55 // pred_check_branch
          %493 = sbr.rel (%p491) target = $region76
        $region75: #{tpu_custom_call.1} parent=55 // pred_region
          %495 = dma.done %s487, 512
        $region76: #{tpu_custom_call.1} parent=55 // pred_fallthru
          _
        %s496 = sand.u32 %s26, 1
        %s497 = scalar_lea.sflag [#allocation5], %s496
        %s498 = sand.u32 %s197, 1
        %s499 = scalar_lea.vmem [#allocation12], %s498
        // Predicated region
        $region77: #{tpu_custom_call.1} parent=55 // pred_check
          %p500 = pneg %p210
        $region78: #{tpu_custom_call.1} parent=55 // pred_check_branch
          %502 = sbr.rel (%p500) target = $region80
        $region79: #{tpu_custom_call.1} parent=55 // pred_region
          %504 = dma.done %s497, 16
        $region80: #{tpu_custom_call.1} parent=55 // pred_fallthru
          _
        // Predicated region
        $region81: #{tpu_custom_call.1} parent=55 // pred_check
          %p505 = pneg %p257
        $region82: #{tpu_custom_call.1} parent=55 // pred_check_branch
          %507 = sbr.rel (%p505) target = $region84
        $region83: #{tpu_custom_call.1} parent=55 // pred_region
          %509 = dma.done [#allocation8], 128
        $region84: #{tpu_custom_call.1} parent=55 // pred_fallthru
          _
        %p510 = pneg %p59
        %p511 = pneg %p56
        %p512 = pneg %p80
        %p513 = pneg %p77
        %s514 = sand.u32 %s26, 1
        %s515 = scalar_lea.sflag [#allocation5], %s514
        %s516 = sand.u32 %s93, 1
        %s517 = smul.addr %s516, 32
        %s518 = scalar_lea.vmem [#allocation9], %s517
        %p519 = pneg %p106
        %p520 = pneg %p103
        %s521 = sand.u32 %s26, 1
        %s522 = scalar_lea.sflag [#allocation5], %s521
        %s523 = sand.u32 %s119, 1
        %s524 = scalar_lea.vmem [#allocation10], %s523
        %p525 = pneg %p132
        %p526 = pneg %p129
        %s527 = sand.u32 %s26, 1
        %s528 = scalar_lea.sflag [#allocation5], %s527
        %s529 = sand.u32 %s145, 1
        %s530 = smul.addr %s529, 32
        %s531 = scalar_lea.vmem [#allocation11], %s530
        %p532 = pneg %p158
        %p533 = pneg %p155
        %p534 = scmp.lt.s32.totalorder %s30, 2
        %s535 = scalar_select %p534, %s30, 2
        %s536 = scalar_lea.vmem %s5, %s535
        %p537 = pneg %p184
        %p538 = pneg %p181
        %s539 = sand.u32 %s26, 1
        %s540 = scalar_lea.sflag [#allocation5], %s539
        %s541 = sand.u32 %s197, 1
        %s542 = scalar_lea.vmem [#allocation12], %s541
        %p543 = pneg %p210
        %p544 = pneg %p207
        %p545 = scmp.lt.s32.totalorder %s30, 2
        %s546 = scalar_select %p545, %s30, 2
        %s547 = scalar_lea.vmem %s7, %s546
        %p548 = pneg %p236
        %p549 = pneg %p233
        %p550 = pneg %p257
        %p551 = pneg %p254
        %p552 = pneg %p278
        %p553 = pneg %p275
        %p554 = pneg %p299
        %p555 = pneg %p296
        %p556 = scmp.lt.s32.totalorder %s30, 2
        %s557 = scalar_select %p556, %s30, 2
        %s558 = scalar_lea.vmem %s5, %s557
        %p559 = scmp.lt.s32.totalorder %s30, 2
        %s560 = scalar_select %p559, %s30, 2
        %s561 = scalar_lea.vmem %s7, %s560
        %p563 = scmp.eq.s32.totalorder %s30, 0
        %p564 = scmp.eq.s32.totalorder %s31, 0
        %p565 = pnand %p563, %p564
        %p566 = pneg %p565
        // Predicated region
        $region85: #{tpu_custom_call.1} parent=55 // pred_check
          _
        $region86: #{tpu_custom_call.1} parent=55 // pred_check_branch
          %568 = sbr.rel (%p565) target = $region88
        $region87: #{tpu_custom_call.1} parent=55 // pred_region
          %v569 = vld [vmem:[#allocation7] sm:$0xff]
          %v570 = vld [vmem:[#allocation7 + $0x8] sm:$0xff]
          %vm571 = vcmask 261120
          %572 = vst.msk [vmem:[#allocation3] sm:$0xff] %vm571, %v569
          %573 = vst.msk [vmem:[#allocation3 + $0x8] sm:$0xff] %vm571, %v570
        $region88: #{tpu_custom_call.1} parent=55 // pred_fallthru
          _
        // Predicated region
        $region89: #{tpu_custom_call.1} parent=55 // pred_check
          %p574 = pneg %p564
        $region90: #{tpu_custom_call.1} parent=55 // pred_check_branch
          %576 = sbr.rel (%p574) target = $region92
        $region91: #{tpu_custom_call.1} parent=55 // pred_region
          %vm577 = vcmask 261120
          %578 = vst.msk [vmem:[#allocation2] sm:$0xff] %vm577, 0.0
          %579 = vst.msk [vmem:[#allocation2 + $0x8] sm:$0xff] %vm577, 0.0
        $region92: #{tpu_custom_call.1} parent=55 // pred_fallthru
          _
        %s580 = smul.u32 %s31, 16
        %s581 = scalar_lea.vmem [#allocation3], %s580
        %v582 = vld [vmem:[%s581] sm:$0xff]
        %v583 = vld [vmem:[%s581 + $0x8] sm:$0xff]
        %v584 = vld [vmem:[#allocation2] sm:$0xff]
        %v585 = vld [vmem:[#allocation2 + $0x8] sm:$0xff]
        %v586 = vld [vmem:[#allocation4] sm:$0xf]
        %v587 = vld [vmem:[#allocation4 + $0x4] sm:$0xf]
        %v588 = vpack.c.bf16 %v583, %v582
        %v591 = vunpack.c.l.b16 %v586
        %v592 = vunpack.c.l.b16 %v587
        %v593 = vpack.c.b16 %v592, %v591
        %vm594 = vcmask 130048
        %v596 = vsel %vm594, %v593, 0
        %598 = vmatpush.bf16.msra.mxu0 0
        %599 = vmatpush.bf16.msra.mxu0 0
        %600 = vmatpush.bf16.msra.mxu0 0
        %601 = vmatpush.bf16.msra.mxu0 0
        %602 = vmatpush.bf16.msra.mxu0 0
        %603 = vmatpush.bf16.msra.mxu0 0
        %604 = vmatpush.bf16.msra.mxu0 0
        %605 = vmatpush.bf16.msra.mxu0 %v588
        %606 = vmatmul.bf16.gmra.mxu0 %v596
        %v607 = vpop.f32.mrf.mxu0
        %v608 = vadd.f32 0.0, %v607
        %v609 = vpop.f32.mrf.mxu0
        %v610 = vadd.f32 0.0, %v609
        %611 = vdwg.mxu0
        %v612 = vadd.f32 %v584, %v608
        %v613 = vadd.f32 %v585, %v610
        %vm614 = vcmask 261120
        %615 = vst.msk [vmem:[#allocation2] sm:$0xff] %vm614, %v612
        %616 = vst.msk [vmem:[#allocation2 + $0x8] sm:$0xff] %vm614, %v613
        // Predicated region
        $region93: #{tpu_custom_call.1} parent=55 // pred_check
          %p617 = pneg %p564
        $region94: #{tpu_custom_call.1} parent=55 // pred_check_branch
          %619 = sbr.rel (%p617) target = $region96
        $region95: #{tpu_custom_call.1} parent=55 // pred_region
          %v620 = vld [vmem:[#allocation3] sm:$0xff]
          %v621 = vld [vmem:[#allocation3 + $0x8] sm:$0xff]
          %v622 = vld [vmem:[#allocation2] sm:$0xff]
          %v623 = vld [vmem:[#allocation2 + $0x8] sm:$0xff]
          %v624 = vadd.f32 %v622, %v620
          %v625 = vadd.f32 %v623, %v621
          %v626 = vld [vmem:[%s471] sm:$0xff]
          %v627 = vld [vmem:[%s471 + $0x8] sm:$0xff]
          %v628 = vld [vmem:[%s471 + $0x10] sm:$0xff]
          %v629 = vld [vmem:[%s471 + $0x18] sm:$0xff]
          %v630 = vld [vmem:[%s480] sm:$0x1]
          %v632 = vperm.slane %v630, 0
          %v635 = vsel %vm614, %v624, 0
          %v638 = vsel %vm614, %v625, 0
          %640 = vmatpush.msra.mxu0 0.0
          %641 = vmatpush.msra.mxu0 0.0
          %642 = vmatpush.msra.mxu0 0.0
          %643 = vmatpush.msra.mxu0 0.0
          %644 = vmatpush.msra.mxu0 0.0
          %645 = vmatpush.msra.mxu0 0.0
          %646 = vmatpush.msra.mxu0 0.0
          %647 = vmatpush.msra.mxu0 0.0
          %648 = vmatpush.msra.mxu0 0.0
          %649 = vmatpush.msra.mxu0 0.0
          %650 = vmatpush.msra.mxu0 0.0
          %651 = vmatpush.msra.mxu0 0.0
          %652 = vmatpush.msra.mxu0 %v629
          %653 = vmatpush.msra.mxu0 %v628
          %654 = vmatpush.msra.mxu0 %v627
          %655 = vmatpush.msra.mxu0 %v626
          %656 = vmatmul.f32.gmra.mxu0 %v635
          %v657 = vpop.f32.mrf.mxu0
          %v658 = vadd.f32 %v632, %v657
          %659 = vmatmul.f32.gmra.mxu0 %v638
          %v660 = vpop.f32.mrf.mxu0
          %v661 = vadd.f32 %v632, %v660
          %662 = vdwg.mxu0
          %v663 = vmax.f32 %v658, 0.0
          %v664 = vmax.f32 %v661, 0.0
          %v665 = vld [vmem:[%s490] sm:$0xff]
          %v666 = vld [vmem:[%s490 + $0x8] sm:$0xff]
          %v667 = vld [vmem:[%s490 + $0x10] sm:$0xff]
          %v668 = vld [vmem:[%s490 + $0x18] sm:$0xff]
          %v669 = vld [vmem:[%s558] sm:$0x1]
          %v671 = vperm.slane %v669, 0
          %v674 = vsel %vm614, %v663, 0
          %v677 = vsel %vm614, %v664, 0
          %679 = vmatpush.msra.mxu0 0.0
          %680 = vmatpush.msra.mxu0 0.0
          %681 = vmatpush.msra.mxu0 0.0
          %682 = vmatpush.msra.mxu0 0.0
          %683 = vmatpush.msra.mxu0 0.0
          %684 = vmatpush.msra.mxu0 0.0
          %685 = vmatpush.msra.mxu0 0.0
          %686 = vmatpush.msra.mxu0 0.0
          %687 = vmatpush.msra.mxu0 0.0
          %688 = vmatpush.msra.mxu0 0.0
          %689 = vmatpush.msra.mxu0 0.0
          %690 = vmatpush.msra.mxu0 0.0
          %691 = vmatpush.msra.mxu0 %v668
          %692 = vmatpush.msra.mxu0 %v667
          %693 = vmatpush.msra.mxu0 %v666
          %694 = vmatpush.msra.mxu0 %v665
          %695 = vmatmul.f32.gmra.mxu0 %v674
          %v696 = vpop.f32.mrf.mxu0
          %v697 = vadd.f32 %v671, %v696
          %698 = vmatmul.f32.gmra.mxu0 %v677
          %v699 = vpop.f32.mrf.mxu0
          %v700 = vadd.f32 %v671, %v699
          %701 = vdwg.mxu0
          %v702 = vmax.f32 %v697, 0.0
          %v703 = vmax.f32 %v700, 0.0
          %v704 = vld [vmem:[%s499] sm:$0x1]
          %v706 = vperm.slane %v704, 0
          %v708 = vmul.f32 %v702, %v706
          %v709 = vmul.f32 %v703, %v706
          %v710 = vld [vmem:[%s561] sm:$0x1]
          %v712 = vperm.slane %v710, 0
          %v714 = vadd.f32 %v708, %v712
          %v715 = vadd.f32 %v709, %v712
          %716 = vst.msk [vmem:[#allocation3] sm:$0xff] %vm614, %v714
          %717 = vst.msk [vmem:[#allocation3 + $0x8] sm:$0xff] %vm614, %v715
          %v718 = vld [vmem:[#allocation13] sm:$0xff]
          %v720 = vsel %vm594, %v718, 0
          %722 = vmatpush.msra.mxu0 0.0
          %723 = vmatpush.msra.mxu0 0.0
          %724 = vmatpush.msra.mxu0 0.0
          %725 = vmatpush.msra.mxu0 0.0
          %726 = vmatpush.msra.mxu0 0.0
          %727 = vmatpush.msra.mxu0 0.0
          %728 = vmatpush.msra.mxu0 0.0
          %729 = vmatpush.msra.mxu0 0.0
          %730 = vmatpush.msra.mxu0 0.0
          %731 = vmatpush.msra.mxu0 0.0
          %732 = vmatpush.msra.mxu0 0.0
          %733 = vmatpush.msra.mxu0 0.0
          %734 = vmatpush.msra.mxu0 0.0
          %735 = vmatpush.msra.mxu0 0.0
          %736 = vmatpush.msra.mxu0 %v715
          %737 = vmatpush.msra.mxu0 %v714
          %738 = vmatmul.f32.gmra.mxu0 %v720
          %v739 = vpop.f32.mrf.mxu0
          %v740 = vadd.f32 0.0, %v739
          %741 = vdwg.mxu0
          // Predicated region
          $region97: #{tpu_custom_call.1} parent=95 // pred_check
            %p742 = pneg %p563
          $region98: #{tpu_custom_call.1} parent=95 // pred_check_branch
            %744 = sbr.rel (%p742) target = $region100
          $region99: #{tpu_custom_call.1} parent=95 // pred_region
            %745 = vst.msk [vmem:[#allocation14] sm:$0xff] %vm614, %v714
            %746 = vst.msk [vmem:[#allocation14 + $0x8] sm:$0xff] %vm614, %v715
            %747 = vst.msk [vmem:[#allocation15] sm:$0xff] %vm614, %v740
          $region100: #{tpu_custom_call.1} parent=95 // pred_fallthru
            _
          %p748 = scmp.eq.s32.totalorder %s30, 1
          // Predicated region
          $region101: #{tpu_custom_call.1} parent=95 // pred_check
            %p749 = pneg %p748
          $region102: #{tpu_custom_call.1} parent=95 // pred_check_branch
            %751 = sbr.rel (%p749) target = $region104
          $region103: #{tpu_custom_call.1} parent=95 // pred_region
            %754 = vrot.lane.b32.xlu0 %v714, 32
            %v755 = vpop.permute.xlu0 %754
            %756 = vrot.lane.b32.xlu0 %v715, 32
            %v757 = vpop.permute.xlu0 %756
            %vm760 = vcmask 523520
            %761 = vst.msk [vmem:[#allocation14] sm:$0xff] %vm760, %v755
            %762 = vst.msk [vmem:[#allocation14 + $0x8] sm:$0xff] %vm760, %v757
            %764 = vrot.lane.b32.xlu0 %v740, 32
            %v765 = vpop.permute.xlu0 %764
            %767 = vst.msk [vmem:[#allocation15] sm:$0xff] %vm760, %v765
          $region104: #{tpu_custom_call.1} parent=95 // pred_fallthru
            _
          %p768 = scmp.eq.s32.totalorder %s30, 2
          // Predicated region
          $region105: #{tpu_custom_call.1} parent=95 // pred_check
            %p769 = pneg %p768
          $region106: #{tpu_custom_call.1} parent=95 // pred_check_branch
            %771 = sbr.rel (%p769) target = $region108
          $region107: #{tpu_custom_call.1} parent=95 // pred_region
            %774 = vrot.lane.b32.xlu0 %v714, 64
            %v775 = vpop.permute.xlu0 %774
            %776 = vrot.lane.b32.xlu0 %v715, 64
            %v777 = vpop.permute.xlu0 %776
            %vm780 = vcmask 785920
            %781 = vst.msk [vmem:[#allocation14] sm:$0xff] %vm780, %v775
            %782 = vst.msk [vmem:[#allocation14 + $0x8] sm:$0xff] %vm780, %v777
            %784 = vrot.lane.b32.xlu0 %v740, 64
            %v785 = vpop.permute.xlu0 %784
            %787 = vst.msk [vmem:[#allocation15] sm:$0xff] %vm780, %v785
          $region108: #{tpu_custom_call.1} parent=95 // pred_fallthru
            _
        $region96: #{tpu_custom_call.1} parent=55 // pred_fallthru
          _
        // Predicated region
        $region109: #{tpu_custom_call.1} parent=55 // pred_check
          %p788 = pneg %p275
        $region110: #{tpu_custom_call.1} parent=55 // pred_check_branch
          %790 = sbr.rel (%p788) target = $region112
        $region111: #{tpu_custom_call.1} parent=55 // pred_region
          %792 = vsyncadd [#allocation6], 0
          %s793 = sshll.u32 [#allocation14], 4
          %s794 = int_to_ptr.vmem [resolvable:$true] %s793
          %s795 = sshll.u32 %s9, 4
          %s796 = int_to_ptr.hbm [resolvable:$true] %s795
          %801 = dma.vmem_to_hbm [thread:$0]  %s794, 256, %s796, [#allocation6], 128, 128, 8
        $region112: #{tpu_custom_call.1} parent=55 // pred_fallthru
          _
        // Predicated region
        $region113: #{tpu_custom_call.1} parent=55 // pred_check
          %p802 = pneg %p296
        $region114: #{tpu_custom_call.1} parent=55 // pred_check_branch
          %804 = sbr.rel (%p802) target = $region116
        $region115: #{tpu_custom_call.1} parent=55 // pred_region
          %806 = vsyncadd [#allocation16], 0
          %s808 = sshll.u32 [#allocation15], 4
          %s809 = int_to_ptr.vmem [resolvable:$true] %s808
          %s810 = sshll.u32 %s10, 4
          %s811 = int_to_ptr.hbm [resolvable:$true] %s810
          %813 = dma.vmem_to_hbm [thread:$0]  %s809, 128, %s811, [#allocation16]
        $region116: #{tpu_custom_call.1} parent=55 // pred_fallthru
          _
        // Predicated region
        $region117: #{tpu_custom_call.1} parent=55 // pred_check
          %p814 = pneg %p275
        $region118: #{tpu_custom_call.1} parent=55 // pred_check_branch
          %816 = sbr.rel (%p814) target = $region120
        $region119: #{tpu_custom_call.1} parent=55 // pred_region
          %818 = dma.done [#allocation6], 256
        $region120: #{tpu_custom_call.1} parent=55 // pred_fallthru
          _
        // Predicated region
        $region121: #{tpu_custom_call.1} parent=55 // pred_check
          %p819 = pneg %p296
        $region122: #{tpu_custom_call.1} parent=55 // pred_check_branch
          %821 = sbr.rel (%p819) target = $region124
        $region123: #{tpu_custom_call.1} parent=55 // pred_region
          %823 = dma.done [#allocation16], 128
        $region124: #{tpu_custom_call.1} parent=55 // pred_fallthru
          _
      $region56: #{tpu_custom_call.1} parent=5 // pred_fallthru
        _
      %p824 = scmp.le.s32.totalorder 2, %s21
      // Predicated region
      $region125: #{tpu_custom_call.1} parent=5 // pred_check
        %p825 = pneg %p824
      $region126: #{tpu_custom_call.1} parent=5 // pred_check_branch
        %827 = sbr.rel (%p825) target = $region128
      $region127: #{tpu_custom_call.1} parent=5 // pred_region
        %s828 = ssub.s32 %s21, 2
      $region128: #{tpu_custom_call.1} parent=5 // pred_fallthru
        _
    $region6: #{tpu_custom_call.1} parent=1 // loop_footer
      %s25 = sadd.s32 1, %s21
    $region7: #{tpu_custom_call.1} parent=1 // loop_footer_branch
      %20 = sbr.rel target = $region3
    $region8: #{tpu_custom_call.1} parent=1 // loop_exit
      _
    %829 = vsyncpa [#allocation5], 1
    %s830 = scalar_lea.sflag [#allocation5], 1
    %831 = vsyncpa %s830, 1
    %832 = vsyncpa [#allocation8], 1
    %833 = vsyncpa [#allocation6], 1
    %s834 = scalar_lea.sflag [#allocation6], 1
    %835 = vsyncpa %s834, 1
    %836 = vsyncpa [#allocation16], 1

</llo_original>
